<compile_context>
chip_gen: v6e
topology: v6e:2x2x1
jax: 0.10.0
libtpu: 0.0.40
codegen_flags: <defaults>
</compile_context>

<pallas_src>
import functools

import jax
import jax.numpy as jnp
from jax.experimental import pallas as pl
from jax.experimental.pallas import tpu as pltpu

_LANE = 128        # lane width (last dim)
_SUBLANE = 8       # f32 sublane height (second-last dim)
_MAX_BATCH_TILE = 2048


def _cdiv(a, b):
    return -(-a // b)


def _round_up(n, m):
    return _cdiv(n, m) * m


def _pad2d(a, rows, cols):
    r, c = a.shape
    if (r, c) == (rows, cols):
        return a
    return jnp.pad(a, ((0, rows - r), (0, cols - c)))


def _apply_act(y, activation):
    if activation == "tanh":
        return jnp.tanh(y)            # EUP slot -> effectively free in-kernel
    if activation == "relu":
        return jnp.maximum(y, 0.0)
    if activation is None:
        return y
    raise ValueError(f"unsupported activation: {activation!r}")


def _batch_tiling(batch):
    """Return (batch_tile, padded_batch).

    Sublane-aligned, capped at _MAX_BATCH_TILE, padding waste <= ~nb*8 rows,
    and >= 2 grid steps whenever possible so the "parallel" batch axis can be
    split across v7x's two TensorCores.
    """
    b8 = _round_up(max(batch, 1), _SUBLANE)
    if b8 <= _SUBLANE:
        return _SUBLANE, _SUBLANE
    nb = max(2, _cdiv(b8, _MAX_BATCH_TILE))
    tb = _round_up(_cdiv(b8, nb), _SUBLANE)
    return tb, nb * tb


# ----------------------------------------------------------------------------
# Pallas kernels
# ----------------------------------------------------------------------------
def _linear_act_kernel(x_ref, wt_ref, b_ref, o_ref, *, activation):
    """y = act(x @ Wt + b); Wt already [Din, Dout_p] (pre-transposed).

    The output ref has the TRUE output width; padded weight columns are sliced
    off before the store (they are exact zeros anyway)."""
    y = jnp.dot(x_ref[...], wt_ref[...], preferred_element_type=jnp.float32)
    y = _apply_act(y + b_ref[...], activation)
    o_ref[...] = y[:, : o_ref.shape[1]].astype(o_ref.dtype)


def _fused_mlp_kernel(x_ref, w0t_ref, b0_ref, w1t_ref, b1_ref, *out_refs,
                      act0, act1, emit_hidden):
    """Fused 2-stage TensorDictSequential hot path; hidden never leaves VMEM
    unless explicitly requested (emit_hidden)."""
    h = jnp.dot(x_ref[...], w0t_ref[...], preferred_element_type=jnp.float32)
    h = _apply_act(h + b0_ref[...], act0)                   # f32 hidden in VMEM
    a = jnp.dot(h.astype(w1t_ref.dtype), w1t_ref[...],
                preferred_element_type=jnp.float32)
    a = _apply_act(a + b1_ref[...], act1)
    if emit_hidden:
        h_ref, a_ref = out_refs
        h_ref[...] = h[:, : h_ref.shape[1]].astype(h_ref.dtype)
    else:
        (a_ref,) = out_refs
    a_ref[...] = a[:, : a_ref.shape[1]].astype(a_ref.dtype)


# ----------------------------------------------------------------------------
# pallas_call wrappers (jit'd: pad -> kernel -> slice is one dispatch)
# ----------------------------------------------------------------------------
@functools.partial(jax.jit, static_argnames=("dout", "activation"))
def _linear_forward(x, wt_p, b_p, *, dout, activation):
    batch, din = x.shape
    din_w, dout_p = wt_p.shape
    assert din_w == din
    tb, bp = _batch_tiling(batch)
    nb = bp // tb
    x_p = x if bp == batch else jnp.pad(x, ((0, bp - batch), (0, 0)))

    isz = x.dtype.itemsize
    cost = pl.CostEstimate(
        flops=2 * batch * din * dout,
        transcendentals=batch * dout if activation == "tanh" else 0,
        bytes_accessed=(x.size * isz
                        + wt_p.size * wt_p.dtype.itemsize
                        + b_p.size * b_p.dtype.itemsize
                        + batch * dout * isz))

    y_p = pl.pallas_call(
        functools.partial(_linear_act_kernel, activation=activation),
        out_shape=jax.ShapeDtypeStruct((bp, dout), x.dtype),
        grid=(nb,),
        in_specs=[
            pl.BlockSpec((tb, din), lambda i: (i, 0)),        # true-width read
            pl.BlockSpec((din, dout_p), lambda i: (0, 0)),    # VMEM-resident
            pl.BlockSpec((1, dout_p), lambda i: (0, 0)),      # VMEM-resident
        ],
        out_specs=pl.BlockSpec((tb, dout), lambda i: (i, 0)),  # true-width store
        compiler_params=pltpu.CompilerParams(
            dimension_semantics=("parallel",),   # v7x: split batch over 2 TCs
            vmem_limit_bytes=32 << 20),
        cost_estimate=cost,
    )(x_p, wt_p, b_p)
    return y_p[:batch] if bp != batch else y_p


@functools.partial(jax.jit,
                   static_argnames=("dh", "da", "act0", "act1", "emit_hidden"))
def _fused_forward(x, w0t_p, b0_p, w1t_p, b1_p, *,
                   dh, da, act0, act1, emit_hidden):
    batch, din = x.shape
    din_w, dh_p = w0t_p.shape
    dh_pk, da_p = w1t_p.shape
    assert din_w == din and dh_pk == dh_p
    tb, bp = _batch_tiling(batch)
    nb = bp // tb
    x_p = x if bp == batch else jnp.pad(x, ((0, bp - batch), (0, 0)))

    isz = x.dtype.itemsize
    out_bytes = batch * da * isz + (batch * dh * isz if emit_hidden else 0)
    wb = sum(w.size * w.dtype.itemsize for w in (w0t_p, b0_p, w1t_p, b1_p))
    cost = pl.CostEstimate(
        flops=2 * batch * (din * dh + dh * da),
        transcendentals=((batch * dh if act0 == "tanh" else 0)
                         + (batch * da if act1 == "tanh" else 0)),
        bytes_accessed=x.size * isz + wb + out_bytes)

    if emit_hidden:
        out_shape = (jax.ShapeDtypeStruct((bp, dh), x.dtype),
                     jax.ShapeDtypeStruct((bp, da), x.dtype))
        out_specs = (pl.BlockSpec((tb, dh), lambda i: (i, 0)),
                     pl.BlockSpec((tb, da), lambda i: (i, 0)))
    else:
        out_shape = jax.ShapeDtypeStruct((bp, da), x.dtype)
        out_specs = pl.BlockSpec((tb, da), lambda i: (i, 0))

    out = pl.pallas_call(
        functools.partial(_fused_mlp_kernel, act0=act0, act1=act1,
                          emit_hidden=emit_hidden),
        out_shape=out_shape,
        grid=(nb,),
        in_specs=[
            pl.BlockSpec((tb, din), lambda i: (i, 0)),      # true-width x read
            pl.BlockSpec((din, dh_p), lambda i: (0, 0)),    # W0^T resident
            pl.BlockSpec((1, dh_p), lambda i: (0, 0)),
            pl.BlockSpec((dh_p, da_p), lambda i: (0, 0)),   # W1^T resident
            pl.BlockSpec((1, da_p), lambda i: (0, 0)),
        ],
        out_specs=out_specs,
        compiler_params=pltpu.CompilerParams(
            dimension_semantics=("parallel",),
            vmem_limit_bytes=32 << 20),
        cost_estimate=cost,
    )(x_p, w0t_p, b0_p, w1t_p, b1_p)

    if emit_hidden:
        h_p, a_p = out
        if bp != batch:
            h_p, a_p = h_p[:batch], a_p[:batch]
        return h_p, a_p
    a_p = out if bp == batch else out[:batch]
    return None, a_p


# ----------------------------------------------------------------------------
# JAX mirrors of TensorDictModule / _TensorDictSequential
# ----------------------------------------------------------------------------
class LinearTDModuleJax:
    """TensorDictModule whose op is y = act(x @ W^T + b) (PyTorch nn.Linear)."""

    def __init__(self, weight, bias, in_key, out_key, activation=None):
        w = jnp.asarray(weight)
        b = jnp.asarray(bias)
        dout, din = w.shape
        self.in_key, self.out_key, self.activation = in_key, out_key, activation
        self.din, self.dout = din, dout
        self.dout_p = _round_up(dout, _LANE)
        # Pre-transpose ONCE (no in-kernel transpose); pad ONLY the output
        # (lane) dim to 128.  K stays at its true width so the x HBM read is
        # not inflated.
        self.wt_pad = _pad2d(w.T, din, self.dout_p)
        self.b_pad = _pad2d(b.reshape(1, dout), 1, self.dout_p)

    def __call__(self, td: dict) -> dict:
        td[self.out_key] = _linear_forward(td[self.in_key], self.wt_pad,
                                           self.b_pad, dout=self.dout,
                                           activation=self.activation)
        return td


class TensorDictSequentialJax:
    """Port of _TensorDictSequential.forward: chain modules over a dict.

    When the chain is exactly two LinearTDModuleJax stages sharing one
    intermediate key, the hot path runs as ONE fused Pallas kernel (the
    intermediate stays in VMEM).  The intermediate is written back to HBM only
    if its key appears in out_keys; otherwise it is dead traffic and skipped.
    The generic per-module loop is the fallback for arbitrary chains.
    """

    def __init__(self, *modules, in_keys, out_keys):
        self._td_modules = list(modules)
        self.in_keys = list(in_keys)
        self.out_keys = list(out_keys)
        self._fusable = (
            len(self._td_modules) == 2
            and all(isinstance(m, LinearTDModuleJax) for m in self._td_modules)
            and self._td_modules[0].out_key == self._td_modules[1].in_key
        )
        if self._fusable:
            m0, m1 = self._td_modules
            # Pad W1^T's K (rows) up to the padded hidden width so the second
            # matmul consumes the VMEM-resident padded hidden directly.  The
            # padded rows are zero, so numerics are unchanged.
            self._w1t_fused = _pad2d(m1.wt_pad, m0.dout_p, m1.dout_p)
            self._emit_hidden = m0.out_key in self.out_keys

    def __call__(self, td: dict) -> dict:
        if self._fusable:
            m0, m1 = self._td_modules
            h, a = _fused_forward(td[m0.in_key], m0.wt_pad, m0.b_pad,
                                  self._w1t_fused, m1.b_pad,
                                  dh=m0.dout, da=m1.dout,
                                  act0=m0.activation, act1=m1.activation,
                                  emit_hidden=self._emit_hidden)
            if self._emit_hidden:
                td[m0.out_key] = h
            td[m1.out_key] = a
            return td
        for module in self._td_modules:   # faithful generic forward()
            td = module(td)
        return td


# ----------------------------------------------------------------------------
# Deterministic construction + smoke test
# ----------------------------------------------------------------------------
if __name__ == "__main__":
    batch, obs_dim, hidden_dim, act_dim = 2, 16, 32, 8

    key = jax.random.PRNGKey(0)
    pkey, xkey = jax.random.split(key)
    k0, k1, k2, k3 = jax.random.split(pkey, 4)
    w0 = jax.random.normal(k0, (hidden_dim, obs_dim), jnp.float32) * 0.1
    b0 = jax.random.normal(k1, (hidden_dim,), jnp.float32) * 0.01
    w1 = jax.random.normal(k2, (act_dim, hidden_dim), jnp.float32) * 0.1
    b1 = jax.random.normal(k3, (act_dim,), jnp.float32) * 0.01
    obs = jax.random.normal(xkey, (batch, obs_dim), jnp.float32)

    # Pure-JAX reference of the sequential semantics.
    h_ref = jnp.tanh(obs @ w0.T + b0)
    a_ref = h_ref @ w1.T + b1

    # Hot path: intermediate "hidden" not requested -> single-output fused kernel.
    seq_fast = TensorDictSequentialJax(
        LinearTDModuleJax(w0, b0, in_key="observation", out_key="hidden",
                          activation="tanh"),
        LinearTDModuleJax(w1, b1, in_key="hidden", out_key="action",
                          activation=None),
        in_keys=["observation"], out_keys=["action"],
    )
    td = seq_fast({"observation": obs})
    action = jax.block_until_ready(td["action"])
    assert action.shape == (batch, act_dim)
    assert "hidden" not in td
    assert jnp.allclose(action, a_ref, atol=1e-5, rtol=1e-5)

    # Variant that also materializes the intermediate key (matches the PyTorch
    # forward(), which writes every module's out_key into the dict).
    seq_full = TensorDictSequentialJax(
        LinearTDModuleJax(w0, b0, in_key="observation", out_key="hidden",
                          activation="tanh"),
        LinearTDModuleJax(w1, b1, in_key="hidden", out_key="action",
                          activation=None),
        in_keys=["observation"], out_keys=["hidden", "action"],
    )
    td2 = seq_full({"observation": obs})
    hidden2 = jax.block_until_ready(td2["hidden"])
    action2 = jax.block_until_ready(td2["action"])
    assert hidden2.shape == (batch, hidden_dim)
    assert jnp.allclose(hidden2, h_ref, atol=1e-5, rtol=1e-5)
    assert jnp.allclose(action2, a_ref, atol=1e-5, rtol=1e-5)

    # Generic fallback: a single TensorDictModule on its own.
    td3 = LinearTDModuleJax(w0, b0, "observation", "hidden",
                            activation="tanh")({"observation": obs})
    assert jnp.allclose(jax.block_until_ready(td3["hidden"]), h_ref,
                        atol=1e-5, rtol=1e-5)

    print("KERNEL_OK")
</pallas_src>

<mosaic_0001>
module attributes {stable_mosaic.version = 11 : i64} {
  func.func @_fused_mlp_kernel(%arg0: i32, %arg1: memref<8x16xf32, #tpu.memory_space<vmem>>, %arg2: memref<16x128xf32, #tpu.memory_space<vmem>>, %arg3: memref<1x128xf32, #tpu.memory_space<vmem>>, %arg4: memref<128x128xf32, #tpu.memory_space<vmem>>, %arg5: memref<1x128xf32, #tpu.memory_space<vmem>>, %arg6: memref<8x8xf32, #tpu.memory_space<vmem>>) attributes {dimension_semantics = [#tpu.dimension_semantics<parallel>], iteration_bounds = array<i64: 1>, scalar_prefetch = 0 : i64, scratch_operands = 0 : i64, tpu.core_type = #tpu.core_type<tc>, window_params = [{transform_indices = @transform_0, window_bounds = array<i64: 8, 16>}, {pipeline_mode = #tpu.pipeline_mode<synchronous>, transform_indices = @transform_1, window_bounds = array<i64: 16, 128>}, {pipeline_mode = #tpu.pipeline_mode<synchronous>, transform_indices = @transform_2, window_bounds = array<i64: 1, 128>}, {pipeline_mode = #tpu.pipeline_mode<synchronous>, transform_indices = @transform_3, window_bounds = array<i64: 128, 128>}, {pipeline_mode = #tpu.pipeline_mode<synchronous>, transform_indices = @transform_4, window_bounds = array<i64: 1, 128>}, {transform_indices = @transform_5, window_bounds = array<i64: 8, 8>}]} {
    %c0 = arith.constant 0 : index
    %c0_0 = arith.constant 0 : index
    %0 = vector.load %arg1[%c0, %c0_0] : memref<8x16xf32, #tpu.memory_space<vmem>>, vector<8x16xf32>
    %c0_1 = arith.constant 0 : index
    %c0_2 = arith.constant 0 : index
    %1 = vector.load %arg2[%c0_1, %c0_2] : memref<16x128xf32, #tpu.memory_space<vmem>>, vector<16x128xf32>
    %cst = arith.constant dense<0.000000e+00> : vector<8x128xf32>
    %2 = tpu.matmul %0, %1, %cst {dimension_numbers = #tpu.dot_dimension_numbers<[1], [0], [0], [1], [0, 0, 1, 1], [], []>} : vector<8x16xf32>, vector<16x128xf32>, vector<8x128xf32> -> vector<8x128xf32>
    %c0_3 = arith.constant 0 : index
    %c0_4 = arith.constant 0 : index
    %3 = vector.load %arg3[%c0_3, %c0_4] : memref<1x128xf32, #tpu.memory_space<vmem>>, vector<1x128xf32>
    %4 = vector.broadcast %3 : vector<1x128xf32> to vector<8x128xf32>
    %5 = arith.addf %2, %4 : vector<8x128xf32>
    %6 = math.tanh %5 : vector<8x128xf32>
    %c0_5 = arith.constant 0 : index
    %c0_6 = arith.constant 0 : index
    %7 = vector.load %arg4[%c0_5, %c0_6] : memref<128x128xf32, #tpu.memory_space<vmem>>, vector<128x128xf32>
    %cst_7 = arith.constant dense<0.000000e+00> : vector<8x128xf32>
    %8 = tpu.matmul %6, %7, %cst_7 {dimension_numbers = #tpu.dot_dimension_numbers<[1], [0], [0], [1], [0, 0, 1, 1], [], []>} : vector<8x128xf32>, vector<128x128xf32>, vector<8x128xf32> -> vector<8x128xf32>
    %c0_8 = arith.constant 0 : index
    %c0_9 = arith.constant 0 : index
    %9 = vector.load %arg5[%c0_8, %c0_9] : memref<1x128xf32, #tpu.memory_space<vmem>>, vector<1x128xf32>
    %10 = vector.broadcast %9 : vector<1x128xf32> to vector<8x128xf32>
    %11 = arith.addf %8, %10 : vector<8x128xf32>
    %12 = vector.extract_strided_slice %11 {offsets = [0, 0], sizes = [8, 8], strides = [1, 1]} : vector<8x128xf32> to vector<8x8xf32>
    %c0_10 = arith.constant 0 : index
    %c0_11 = arith.constant 0 : index
    %13 = vector.load %arg6[%c0_10, %c0_11] : memref<8x8xf32, #tpu.memory_space<vmem>>, vector<8x8xf32>
    tpu.vector_store %arg6[%c0_10, %c0_11], %12 {strides = array<i32>} : memref<8x8xf32, #tpu.memory_space<vmem>>, vector<8x8xf32>,
    return
  }
  func.func @transform_0(%arg0: i32) -> (i32, i32) {
    %c0_i32 = arith.constant 0 : i32
    %c0_i32_0 = arith.constant 0 : i32
    return %arg0, %c0_i32 : i32, i32
  }
  func.func @transform_1(%arg0: i32) -> (i32, i32) {
    %c0_i32 = arith.constant 0 : i32
    %c0_i32_0 = arith.constant 0 : i32
    %c0_i32_1 = arith.constant 0 : i32
    return %c0_i32, %c0_i32_0 : i32, i32
  }
  func.func @transform_2(%arg0: i32) -> (i32, i32) {
    %c0_i32 = arith.constant 0 : i32
    %c0_i32_0 = arith.constant 0 : i32
    %c0_i32_1 = arith.constant 0 : i32
    return %c0_i32, %c0_i32_0 : i32, i32
  }
  func.func @transform_3(%arg0: i32) -> (i32, i32) {
    %c0_i32 = arith.constant 0 : i32
    %c0_i32_0 = arith.constant 0 : i32
    %c0_i32_1 = arith.constant 0 : i32
    return %c0_i32, %c0_i32_0 : i32, i32
  }
  func.func @transform_4(%arg0: i32) -> (i32, i32) {
    %c0_i32 = arith.constant 0 : i32
    %c0_i32_0 = arith.constant 0 : i32
    %c0_i32_1 = arith.constant 0 : i32
    return %c0_i32, %c0_i32_0 : i32, i32
  }
  func.func @transform_5(%arg0: i32) -> (i32, i32) {
    %c0_i32 = arith.constant 0 : i32
    %c0_i32_0 = arith.constant 0 : i32
    return %arg0, %c0_i32 : i32, i32
  }
}

</mosaic_0001>

<llo_original>
// kernel: _fused_forward.1
$region0: #{_fused_forward.1}
  #allocation0 [shape = 'u32[]', space=smem, size = 0x4, offset = 0x4, fixed_abs, tag = 'smem constant byte address 0x4 - core index']
  #allocation1 [shape = 'u32[144,128]{1,0:T(1,128)}', space=vmem, size = 0x12000, scoped, tag = 'internal scratch']
  %s0 = inlined_call_operand.vmem [shape: f32[8,16], index: 0, kind: input, shape index: {}]
  %s1 = inlined_call_operand.hbm [shape: f32[16,128], index: 1, kind: input, shape index: {}]
  %s2 = inlined_call_operand.vmem [shape: f32[1,128], index: 2, kind: input, shape index: {}]
  %s3 = inlined_call_operand.hbm [shape: f32[128,128], index: 3, kind: input, shape index: {}]
  %s4 = inlined_call_operand.vmem [shape: f32[1,128], index: 4, kind: input, shape index: {}]
  %s5 = inlined_call_operand.vmem [shape: f32[8,8], index: 5, kind: output, shape index: {}]
  %s6 = sld [smem:[#allocation0]]
  $region38: #{_fused_forward.1} parent=0
    _
  %s8 = ssub.s32 1, %s6
  %s9 = scalar_select 0, %s8, %s6
  $region1: #{_fused_forward.1} parent=0
    #allocation2 [shape = 'u8[8192]{0}', space=vmem, size = 0x2000, scoped, tag = 'input window, operand 1, single buffered']
    #allocation3 [shape = 's32[1]{0}', space=sflag, size = 0x4, scoped, tag = 'scoped memory for _fused_forward.1']
    #allocation4 [shape = 'u8[65536]{0}', space=vmem, size = 0x10000, scoped, tag = 'input window, operand 3, single buffered']
    #allocation5 [shape = 's32[1]{0}', space=sflag, size = 0x4, scoped, tag = 'scoped memory for _fused_forward.1']
    %10 = vsyncpa [#allocation3], 0
    %11 = vsyncpa [#allocation5], 0
    // Predicated region
    $region2: #{_fused_forward.1} parent=1 // pred_check
      _
    $region3: #{_fused_forward.1} parent=1 // pred_check_branch
      %13 = sbr.rel (0) target = $region5
    $region4: #{_fused_forward.1} parent=1 // pred_region
      _
    $region5: #{_fused_forward.1} parent=1 // pred_fallthru
      _
    // Predicated region
    $region6: #{_fused_forward.1} parent=1 // pred_check
      _
    $region7: #{_fused_forward.1} parent=1 // pred_check_branch
      %15 = sbr.rel (0) target = $region9
    $region8: #{_fused_forward.1} parent=1 // pred_region
      %s17 = ssub.s32 256, 256
      %18 = vsyncadd [#allocation3], %s17
      %s19 = sshll.u32 [#allocation2], 4
      %s20 = int_to_ptr.vmem [resolvable:$true] %s19
      %25 = dma.hbm_to_vmem [thread:$0]  %s1, 256, %s20, [#allocation3], 128, 128, 8
    $region9: #{_fused_forward.1} parent=1 // pred_fallthru
      _
    // Predicated region
    $region10: #{_fused_forward.1} parent=1 // pred_check
      _
    $region11: #{_fused_forward.1} parent=1 // pred_check_branch
      %27 = sbr.rel (0) target = $region13
    $region12: #{_fused_forward.1} parent=1 // pred_region
      _
    $region13: #{_fused_forward.1} parent=1 // pred_fallthru
      _
    // Predicated region
    $region14: #{_fused_forward.1} parent=1 // pred_check
      _
    $region15: #{_fused_forward.1} parent=1 // pred_check_branch
      %29 = sbr.rel (0) target = $region17
    $region16: #{_fused_forward.1} parent=1 // pred_region
      %s31 = ssub.s32 2048, 2048
      %32 = vsyncadd [#allocation5], %s31
      %s33 = sshll.u32 [#allocation4], 4
      %s34 = int_to_ptr.vmem [resolvable:$true] %s33
      %39 = dma.hbm_to_vmem [thread:$0]  %s3, 2048, %s34, [#allocation5], 128, 128, 8
    $region17: #{_fused_forward.1} parent=1 // pred_fallthru
      _
    // Predicated region
    $region18: #{_fused_forward.1} parent=1 // pred_check
      _
    $region19: #{_fused_forward.1} parent=1 // pred_check_branch
      %41 = sbr.rel (0) target = $region21
    $region20: #{_fused_forward.1} parent=1 // pred_region
      _
    $region21: #{_fused_forward.1} parent=1 // pred_fallthru
      _
    // Predicated region
    $region22: #{_fused_forward.1} parent=1 // pred_check
      _
    $region23: #{_fused_forward.1} parent=1 // pred_check_branch
      %43 = sbr.rel (0) target = $region25
    $region24: #{_fused_forward.1} parent=1 // pred_region
      %44 = dma.done [#allocation3], 256
    $region25: #{_fused_forward.1} parent=1 // pred_fallthru
      _
    // Predicated region
    $region26: #{_fused_forward.1} parent=1 // pred_check
      _
    $region27: #{_fused_forward.1} parent=1 // pred_check_branch
      %46 = sbr.rel (0) target = $region29
    $region28: #{_fused_forward.1} parent=1 // pred_region
      %47 = dma.done [#allocation5], 2048
    $region29: #{_fused_forward.1} parent=1 // pred_fallthru
      _
    %v48 = vld [vmem:[%s0] sm:$0xff]
    %v49 = vld [vmem:[#allocation2] sm:$0xff]
    %v50 = vld [vmem:[#allocation2 + $0x8] sm:$0xff]
    %v51 = vld [vmem:[%s2] sm:$0x1]
    %v53 = vlaneseq
    %v54 = vshrl.u32 %v53, 7
    %v55 = vsub.s32 0, %v54
    %v56 = vrot.slane %v51, %v55
    %vm58 = vcmask 130048
    %v60 = vsel %vm58, %v48, 0
    %62 = vmatprep.subr.mxu0 0.0
    %63 = vmatpush1.msra.mxu0 0.0
    %64 = vmatprep.subr.mxu0 0.0
    %65 = vmatpush1.msra.mxu0 0.0
    %66 = vmatprep.subr.mxu0 0.0
    %67 = vmatpush1.msra.mxu0 0.0
    %68 = vmatprep.subr.mxu0 0.0
    %69 = vmatpush1.msra.mxu0 0.0
    %70 = vmatprep.subr.mxu0 0.0
    %71 = vmatpush1.msra.mxu0 0.0
    %72 = vmatprep.subr.mxu0 0.0
    %73 = vmatpush1.msra.mxu0 0.0
    %74 = vmatprep.subr.mxu0 0.0
    %75 = vmatpush1.msra.mxu0 0.0
    %76 = vmatprep.subr.mxu0 0.0
    %77 = vmatpush1.msra.mxu0 0.0
    %78 = vmatprep.subr.mxu0 0.0
    %79 = vmatpush1.msra.mxu0 0.0
    %80 = vmatprep.subr.mxu0 0.0
    %81 = vmatpush1.msra.mxu0 0.0
    %82 = vmatprep.subr.mxu0 0.0
    %83 = vmatpush1.msra.mxu0 0.0
    %84 = vmatprep.subr.mxu0 0.0
    %85 = vmatpush1.msra.mxu0 0.0
    %86 = vmatprep.subr.mxu0 0.0
    %87 = vmatpush1.msra.mxu0 0.0
    %88 = vmatprep.subr.mxu0 0.0
    %89 = vmatpush1.msra.mxu0 0.0
    %90 = vmatprep.subr.mxu0 0.0
    %91 = vmatpush1.msra.mxu0 %v50
    %92 = vmatprep.subr.mxu0 0.0
    %93 = vmatpush1.msra.mxu0 %v49
    %94 = vmatprep.subr.mxu0 0.0
    %95 = vmatpush2.msra.mxu0 0.0
    %96 = vmatprep.subr.mxu0 0.0
    %97 = vmatpush2.msra.mxu0 0.0
    %98 = vmatprep.subr.mxu0 0.0
    %99 = vmatpush2.msra.mxu0 0.0
    %100 = vmatprep.subr.mxu0 0.0
    %101 = vmatpush2.msra.mxu0 0.0
    %102 = vmatprep.subr.mxu0 0.0
    %103 = vmatpush2.msra.mxu0 0.0
    %104 = vmatprep.subr.mxu0 0.0
    %105 = vmatpush2.msra.mxu0 0.0
    %106 = vmatprep.subr.mxu0 0.0
    %107 = vmatpush2.msra.mxu0 0.0
    %108 = vmatprep.subr.mxu0 0.0
    %109 = vmatpush2.msra.mxu0 0.0
    %110 = vmatprep.subr.mxu0 0.0
    %111 = vmatpush2.msra.mxu0 0.0
    %112 = vmatprep.subr.mxu0 0.0
    %113 = vmatpush2.msra.mxu0 0.0
    %114 = vmatprep.subr.mxu0 0.0
    %115 = vmatpush2.msra.mxu0 0.0
    %116 = vmatprep.subr.mxu0 0.0
    %117 = vmatpush2.msra.mxu0 0.0
    %118 = vmatprep.subr.mxu0 0.0
    %119 = vmatpush2.msra.mxu0 0.0
    %120 = vmatprep.subr.mxu0 0.0
    %121 = vmatpush2.msra.mxu0 0.0
    %122 = vmatprep.subr.mxu0 0.0
    %123 = vmatpush2.msra.mxu0 0.0
    %124 = vmatprep.subr.mxu0 0.0
    %125 = vmatpush2.msra.mxu0 0.0
    %126 = vmatprep.mubr.f32.mxu0 0.0
    %127 = vmatmul.mubr.f32.gmra.mxu0 %v60
    %v128 = vpop.f32.mrf.mxu0
    %v129 = vadd.f32 %v56, %v128
    %v130 = vpop.f32.mrf.mxu0
    %131 = vdwg.mxu0
    %v132 = vtanh.pop %v129
    %v133 = vld [vmem:[#allocation4] sm:$0xff]
    %v134 = vld [vmem:[#allocation4 + $0x8] sm:$0xff]
    %v135 = vld [vmem:[#allocation4 + $0x10] sm:$0xff]
    %v136 = vld [vmem:[#allocation4 + $0x18] sm:$0xff]
    %v137 = vld [vmem:[#allocation4 + $0x20] sm:$0xff]
    %v138 = vld [vmem:[#allocation4 + $0x28] sm:$0xff]
    %v139 = vld [vmem:[#allocation4 + $0x30] sm:$0xff]
    %v140 = vld [vmem:[#allocation4 + $0x38] sm:$0xff]
    %v141 = vld [vmem:[#allocation4 + $0x40] sm:$0xff]
    %v142 = vld [vmem:[#allocation4 + $0x48] sm:$0xff]
    %v143 = vld [vmem:[#allocation4 + $0x50] sm:$0xff]
    %v144 = vld [vmem:[#allocation4 + $0x58] sm:$0xff]
    %v145 = vld [vmem:[#allocation4 + $0x60] sm:$0xff]
    %v146 = vld [vmem:[#allocation4 + $0x68] sm:$0xff]
    %v147 = vld [vmem:[#allocation4 + $0x70] sm:$0xff]
    %v148 = vld [vmem:[#allocation4 + $0x78] sm:$0xff]
    %v149 = vld [vmem:[%s4] sm:$0x1]
    %v151 = vlaneseq
    %v152 = vshrl.u32 %v151, 7
    %v153 = vsub.s32 0, %v152
    %v154 = vrot.slane %v149, %v153
    %156 = vmatprep.subr.mxu0 0.0
    %157 = vmatpush1.msra.mxu0 %v148
    %158 = vmatprep.subr.mxu0 0.0
    %159 = vmatpush1.msra.mxu0 %v147
    %160 = vmatprep.subr.mxu0 0.0
    %161 = vmatpush1.msra.mxu0 %v146
    %162 = vmatprep.subr.mxu0 0.0
    %163 = vmatpush1.msra.mxu0 %v145
    %164 = vmatprep.subr.mxu0 0.0
    %165 = vmatpush1.msra.mxu0 %v144
    %166 = vmatprep.subr.mxu0 0.0
    %167 = vmatpush1.msra.mxu0 %v143
    %168 = vmatprep.subr.mxu0 0.0
    %169 = vmatpush1.msra.mxu0 %v142
    %170 = vmatprep.subr.mxu0 0.0
    %171 = vmatpush1.msra.mxu0 %v141
    %172 = vmatprep.subr.mxu0 0.0
    %173 = vmatpush1.msra.mxu0 %v140
    %174 = vmatprep.subr.mxu0 0.0
    %175 = vmatpush1.msra.mxu0 %v139
    %176 = vmatprep.subr.mxu0 0.0
    %177 = vmatpush1.msra.mxu0 %v138
    %178 = vmatprep.subr.mxu0 0.0
    %179 = vmatpush1.msra.mxu0 %v137
    %180 = vmatprep.subr.mxu0 0.0
    %181 = vmatpush1.msra.mxu0 %v136
    %182 = vmatprep.subr.mxu0 0.0
    %183 = vmatpush1.msra.mxu0 %v135
    %184 = vmatprep.subr.mxu0 0.0
    %185 = vmatpush1.msra.mxu0 %v134
    %186 = vmatprep.subr.mxu0 0.0
    %187 = vmatpush1.msra.mxu0 %v133
    %188 = vmatprep.subr.mxu0 0.0
    %189 = vmatpush2.msra.mxu0 0.0
    %190 = vmatprep.subr.mxu0 0.0
    %191 = vmatpush2.msra.mxu0 0.0
    %192 = vmatprep.subr.mxu0 0.0
    %193 = vmatpush2.msra.mxu0 0.0
    %194 = vmatprep.subr.mxu0 0.0
    %195 = vmatpush2.msra.mxu0 0.0
    %196 = vmatprep.subr.mxu0 0.0
    %197 = vmatpush2.msra.mxu0 0.0
    %198 = vmatprep.subr.mxu0 0.0
    %199 = vmatpush2.msra.mxu0 0.0
    %200 = vmatprep.subr.mxu0 0.0
    %201 = vmatpush2.msra.mxu0 0.0
    %202 = vmatprep.subr.mxu0 0.0
    %203 = vmatpush2.msra.mxu0 0.0
    %204 = vmatprep.subr.mxu0 0.0
    %205 = vmatpush2.msra.mxu0 0.0
    %206 = vmatprep.subr.mxu0 0.0
    %207 = vmatpush2.msra.mxu0 0.0
    %208 = vmatprep.subr.mxu0 0.0
    %209 = vmatpush2.msra.mxu0 0.0
    %210 = vmatprep.subr.mxu0 0.0
    %211 = vmatpush2.msra.mxu0 0.0
    %212 = vmatprep.subr.mxu0 0.0
    %213 = vmatpush2.msra.mxu0 0.0
    %214 = vmatprep.subr.mxu0 0.0
    %215 = vmatpush2.msra.mxu0 0.0
    %216 = vmatprep.subr.mxu0 0.0
    %217 = vmatpush2.msra.mxu0 0.0
    %218 = vmatprep.subr.mxu0 0.0
    %219 = vmatpush2.msra.mxu0 0.0
    %220 = vmatprep.mubr.f32.mxu0 0.0
    %221 = vmatmul.mubr.f32.gmra.mxu0 %v132
    %v222 = vpop.f32.mrf.mxu0
    %v223 = vadd.f32 %v154, %v222
    %v224 = vpop.f32.mrf.mxu0
    %225 = vdwg.mxu0
    %vm226 = vcmask 64512
    %227 = vst.msk [vmem:[%s5] sm:$0xff] %vm226, %v223
    // Predicated region
    $region30: #{_fused_forward.1} parent=1 // pred_check
      _
    $region31: #{_fused_forward.1} parent=1 // pred_check_branch
      %229 = sbr.rel (0) target = $region33
    $region32: #{_fused_forward.1} parent=1 // pred_region
      _
    $region33: #{_fused_forward.1} parent=1 // pred_fallthru
      _
    // Predicated region
    $region34: #{_fused_forward.1} parent=1 // pred_check
      _
    $region35: #{_fused_forward.1} parent=1 // pred_check_branch
      %231 = sbr.rel (0) target = $region37
    $region36: #{_fused_forward.1} parent=1 // pred_region
      _
    $region37: #{_fused_forward.1} parent=1 // pred_fallthru
      _
    %232 = vsyncpa [#allocation3], 1
    %233 = vsyncpa [#allocation5], 1

</llo_original>
